<compile_context>
chip_gen: v5e
topology: v5e:2x2
jax: 0.10.0
libtpu: 0.0.40
codegen_flags: <defaults>
</compile_context>

<pallas_src>
import functools

import jax
import jax.numpy as jnp
from jax.experimental import pallas as pl
from jax.experimental.pallas import tpu as pltpu


def _round_up(x, m):
    return (x + m - 1) // m * m


def _simconv_kernel(patches_ref, w_ref, scale_ref, bias_ref, o_ref):
    # MXU matmul, bf16 operands, f32 accumulate: [TM, Kp] x [Kp, Cp] -> [TM, Cp]
    acc = jnp.dot(patches_ref[...], w_ref[...], preferred_element_type=jnp.float32)
    # Folded BatchNorm (inference, running stats) + SiLU, all in f32.
    y = acc * scale_ref[...] + bias_ref[...]
    o_ref[...] = y * jax.nn.sigmoid(y)


def _im2col_nhwc(x_nhwc, k, s):
    """x_nhwc is already zero-padded. Returns [N*OH*OW, k*k*C] patch matrix."""
    N, H, W, C = x_nhwc.shape
    OH = (H - k) // s + 1
    OW = (W - k) // s + 1
    slabs = []
    for dy in range(k):
        for dx in range(k):
            slabs.append(x_nhwc[:, dy:dy + s * OH:s, dx:dx + s * OW:s, :])
    cols = jnp.stack(slabs, axis=-2)                 # [N, OH, OW, k*k, C]
    return cols.reshape(N * OH * OW, k * k * C), (N, OH, OW)


@functools.partial(jax.jit, static_argnames=("kernel_size", "stride"))
def simconv_forward(x_nchw, weight, gamma, beta, running_mean, running_var,
                    kernel_size, stride, eps=1e-5):
    """Equivalent of SimConv(in,out,k,s).forward(x) in eval mode (bias=False, act=SiLU)."""
    k, s = kernel_size, stride
    pad = k // 2  # matches PyTorch padding=k//2 (exact for odd k, as in the module spec)
    Cout, Cin, _, _ = weight.shape

    # ---- glue: layout + padding + im2col (NCHW -> NHWC) ----
    # TODO(synk): fuse im2col into the kernel (per-tap accumulation from NHWC with a
    # kh*kw reduction grid axis) to remove the k^2 HBM duplication of the input.
    x = jnp.transpose(x_nchw, (0, 2, 3, 1))  # NHWC
    x = jnp.pad(x, ((0, 0), (pad, pad), (pad, pad), (0, 0)))
    patches, (N, OH, OW) = _im2col_nhwc(x, k, s)              # [M, K]
    M, K = patches.shape

    # Lane-dense padding: K, Cout -> multiples of 128; tile M.
    K_pad = _round_up(K, 128)
    C_pad = _round_up(Cout, 128)
    TM = min(512, _round_up(M, 8))          # M-tile (>=512 rows for big shapes)
    M_pad = _round_up(M, TM)
    num_m_tiles = M_pad // TM

    patches_p = jnp.pad(patches, ((0, M_pad - M), (0, K_pad - K))).astype(jnp.bfloat16)

    # weight [Cout, Cin, kh, kw] -> [kh, kw, Cin, Cout] -> [K, Cout] -> padded bf16
    w_mat = jnp.transpose(weight, (2, 3, 1, 0)).reshape(K, Cout)
    w_p = jnp.pad(w_mat, ((0, K_pad - K), (0, C_pad - Cout))).astype(jnp.bfloat16)

    # fold BatchNorm (running stats) into per-channel scale/bias, f32, zero-padded
    scale = (gamma / jnp.sqrt(running_var + eps)).astype(jnp.float32)        # [Cout]
    bias = beta.astype(jnp.float32) - running_mean.astype(jnp.float32) * scale
    scale_p = jnp.pad(scale, (0, C_pad - Cout)).reshape(1, C_pad)
    bias_p = jnp.pad(bias, (0, C_pad - Cout)).reshape(1, C_pad)

    cost = pl.CostEstimate(
        flops=2 * M_pad * K_pad * C_pad,
        transcendentals=M_pad * C_pad,
        bytes_accessed=(M_pad * K_pad * 2 + K_pad * C_pad * 2
                        + 2 * C_pad * 4 + M_pad * C_pad * 4),
    )

    # ---- hot path: Pallas kernel (matmul + BN affine + SiLU), tiled over M ----
    out_p = pl.pallas_call(
        _simconv_kernel,
        out_shape=jax.ShapeDtypeStruct((M_pad, C_pad), jnp.float32),
        grid=(num_m_tiles,),
        in_specs=[
            pl.BlockSpec((TM, K_pad), lambda i: (i, 0)),      # streamed patch tiles
            pl.BlockSpec((K_pad, C_pad), lambda i: (0, 0)),   # resident weights
            pl.BlockSpec((1, C_pad), lambda i: (0, 0)),       # resident BN scale
            pl.BlockSpec((1, C_pad), lambda i: (0, 0)),       # resident BN bias
        ],
        out_specs=pl.BlockSpec((TM, C_pad), lambda i: (i, 0)),
        compiler_params=pltpu.CompilerParams(
            dimension_semantics=("parallel",)),               # megacore on v7x
        cost_estimate=cost,
    )(patches_p, w_p, scale_p, bias_p)

    # slice off padding, back to PyTorch NCHW output
    out = out_p[:M, :Cout].reshape(N, OH, OW, Cout)
    return jnp.transpose(out, (0, 3, 1, 2))


def _reference(x_nchw, weight, gamma, beta, running_mean, running_var,
               kernel_size, stride, eps=1e-5):
    pad = kernel_size // 2
    y = jax.lax.conv_general_dilated(
        x_nchw, weight, window_strides=(stride, stride),
        padding=((pad, pad), (pad, pad)),
        dimension_numbers=("NCHW", "OIHW", "NCHW"))
    scale = (gamma / jnp.sqrt(running_var + eps)).reshape(1, -1, 1, 1)
    bias = (beta - running_mean * gamma / jnp.sqrt(running_var + eps)).reshape(1, -1, 1, 1)
    y = y * scale + bias
    return y * jax.nn.sigmoid(y)


if __name__ == "__main__":
    # SimConv(in_channels=4, out_channels=8, kernel_size=3, stride=2), eval mode.
    N, Cin, H, W = 2, 4, 16, 16
    Cout, ksize, stride = 8, 3, 2

    key = jax.random.PRNGKey(0)
    k_x, k_w, k_g, k_b, k_m, k_v = jax.random.split(key, 6)

    x = jax.random.normal(k_x, (N, Cin, H, W), dtype=jnp.float32)
    weight = 0.1 * jax.random.normal(k_w, (Cout, Cin, ksize, ksize), dtype=jnp.float32)
    gamma = 1.0 + 0.1 * jax.random.normal(k_g, (Cout,), dtype=jnp.float32)
    beta = 0.1 * jax.random.normal(k_b, (Cout,), dtype=jnp.float32)
    running_mean = 0.1 * jax.random.normal(k_m, (Cout,), dtype=jnp.float32)
    running_var = jnp.abs(jax.random.normal(k_v, (Cout,), dtype=jnp.float32)) + 0.5

    out = simconv_forward(x, weight, gamma, beta, running_mean, running_var,
                          kernel_size=ksize, stride=stride)
    out = jax.block_until_ready(out)

    ref = _reference(x, weight, gamma, beta, running_mean, running_var,
                     kernel_size=ksize, stride=stride)
    assert out.shape == (N, Cout, H // stride, W // stride)
    # bf16 matmul operands (f32 accumulate) vs f32 reference -> bf16-level tolerance.
    err = float(jnp.max(jnp.abs(out - ref)))
    assert jnp.allclose(out, ref, atol=3e-2, rtol=3e-2), f"max abs err {err}"

    print("KERNEL_OK")
</pallas_src>

<mosaic_0001>
module attributes {stable_mosaic.version = 11 : i64} {
  func.func @_simconv_kernel(%arg0: i32, %arg1: memref<128x128xbf16, #tpu.memory_space<vmem>>, %arg2: memref<128x128xbf16, #tpu.memory_space<vmem>>, %arg3: memref<1x128xf32, #tpu.memory_space<vmem>>, %arg4: memref<1x128xf32, #tpu.memory_space<vmem>>, %arg5: memref<128x128xf32, #tpu.memory_space<vmem>>) attributes {dimension_semantics = [#tpu.dimension_semantics<parallel>], iteration_bounds = array<i64: 1>, scalar_prefetch = 0 : i64, scratch_operands = 0 : i64, tpu.core_type = #tpu.core_type<tc>, window_params = [{transform_indices = @transform_0, window_bounds = array<i64: 128, 128>}, {pipeline_mode = #tpu.pipeline_mode<synchronous>, transform_indices = @transform_1, window_bounds = array<i64: 128, 128>}, {pipeline_mode = #tpu.pipeline_mode<synchronous>, transform_indices = @transform_2, window_bounds = array<i64: 1, 128>}, {pipeline_mode = #tpu.pipeline_mode<synchronous>, transform_indices = @transform_3, window_bounds = array<i64: 1, 128>}, {transform_indices = @transform_4, window_bounds = array<i64: 128, 128>}]} {
    %c0 = arith.constant 0 : index
    %c0_0 = arith.constant 0 : index
    %0 = vector.load %arg1[%c0, %c0_0] : memref<128x128xbf16, #tpu.memory_space<vmem>>, vector<128x128xbf16>
    %c0_1 = arith.constant 0 : index
    %c0_2 = arith.constant 0 : index
    %1 = vector.load %arg2[%c0_1, %c0_2] : memref<128x128xbf16, #tpu.memory_space<vmem>>, vector<128x128xbf16>
    %cst = arith.constant dense<0.000000e+00> : vector<128x128xf32>
    %2 = tpu.matmul %0, %1, %cst {dimension_numbers = #tpu.dot_dimension_numbers<[1], [0], [0], [1], [0, 0, 1, 1], [], []>} : vector<128x128xbf16>, vector<128x128xbf16>, vector<128x128xf32> -> vector<128x128xf32>
    %c0_3 = arith.constant 0 : index
    %c0_4 = arith.constant 0 : index
    %3 = vector.load %arg3[%c0_3, %c0_4] : memref<1x128xf32, #tpu.memory_space<vmem>>, vector<1x128xf32>
    %4 = vector.broadcast %3 : vector<1x128xf32> to vector<128x128xf32>
    %5 = arith.mulf %2, %4 : vector<128x128xf32>
    %c0_5 = arith.constant 0 : index
    %c0_6 = arith.constant 0 : index
    %6 = vector.load %arg4[%c0_5, %c0_6] : memref<1x128xf32, #tpu.memory_space<vmem>>, vector<1x128xf32>
    %7 = vector.broadcast %6 : vector<1x128xf32> to vector<128x128xf32>
    %8 = arith.addf %5, %7 : vector<128x128xf32>
    %9 = arith.negf %8 : vector<128x128xf32>
    %10 = math.exp %9 : vector<128x128xf32>
    %cst_7 = arith.constant 1.000000e+00 : f32
    %11 = vector.broadcast %cst_7 : f32 to vector<128x128xf32>
    %12 = arith.addf %11, %10 : vector<128x128xf32>
    %13 = arith.divf %11, %12 : vector<128x128xf32>
    %14 = arith.mulf %8, %13 : vector<128x128xf32>
    %c0_8 = arith.constant 0 : index
    %c0_9 = arith.constant 0 : index
    %15 = vector.load %arg5[%c0_8, %c0_9] : memref<128x128xf32, #tpu.memory_space<vmem>>, vector<128x128xf32>
    tpu.vector_store %arg5[%c0_8, %c0_9], %14 {strides = array<i32>} : memref<128x128xf32, #tpu.memory_space<vmem>>, vector<128x128xf32>,
    return
  }
  func.func @transform_0(%arg0: i32) -> (i32, i32) {
    %c0_i32 = arith.constant 0 : i32
    %c0_i32_0 = arith.constant 0 : i32
    return %arg0, %c0_i32 : i32, i32
  }
  func.func @transform_1(%arg0: i32) -> (i32, i32) {
    %c0_i32 = arith.constant 0 : i32
    %c0_i32_0 = arith.constant 0 : i32
    %c0_i32_1 = arith.constant 0 : i32
    return %c0_i32, %c0_i32_0 : i32, i32
  }
  func.func @transform_2(%arg0: i32) -> (i32, i32) {
    %c0_i32 = arith.constant 0 : i32
    %c0_i32_0 = arith.constant 0 : i32
    %c0_i32_1 = arith.constant 0 : i32
    return %c0_i32, %c0_i32_0 : i32, i32
  }
  func.func @transform_3(%arg0: i32) -> (i32, i32) {
    %c0_i32 = arith.constant 0 : i32
    %c0_i32_0 = arith.constant 0 : i32
    %c0_i32_1 = arith.constant 0 : i32
    return %c0_i32, %c0_i32_0 : i32, i32
  }
  func.func @transform_4(%arg0: i32) -> (i32, i32) {
    %c0_i32 = arith.constant 0 : i32
    %c0_i32_0 = arith.constant 0 : i32
    return %arg0, %c0_i32 : i32, i32
  }
}

</mosaic_0001>

<llo_original>
// kernel: simconv_forward.1
$region0: #{simconv_forward.1}
  #allocation0 [shape = 'u32[]', space=smem, size = 0x4, offset = 0x4, fixed_abs, tag = 'smem constant byte address 0x4 - core index']
  #allocation1 [shape = 'u32[72,128]{1,0:T(1,128)}', space=vmem, size = 0x9000, scoped, tag = 'internal scratch']
  %s0 = inlined_call_operand.vmem [shape: bf16[128,128], index: 0, kind: input, shape index: {}]
  %s1 = inlined_call_operand.vmem [shape: bf16[128,128], index: 1, kind: input, shape index: {}]
  %s2 = inlined_call_operand.vmem [shape: f32[1,128], index: 2, kind: input, shape index: {}]
  %s3 = inlined_call_operand.vmem [shape: f32[1,128], index: 3, kind: input, shape index: {}]
  %s4 = inlined_call_operand.vmem [shape: f32[128,128], index: 4, kind: output, shape index: {}]
  %s5 = sld [smem:[#allocation0]]
  $region26: #{simconv_forward.1} parent=0
    _
  %s7 = ssub.s32 1, %s5
  %s8 = scalar_select 0, %s7, %s5
  // Predicated region
  $region2: #{simconv_forward.1} parent=0 // pred_check
    _
  $region3: #{simconv_forward.1} parent=0 // pred_check_branch
    %10 = sbr.rel (0) target = $region5
  $region4: #{simconv_forward.1} parent=0 // pred_region
    _
  $region5: #{simconv_forward.1} parent=0 // pred_fallthru
    _
  // Predicated region
  $region6: #{simconv_forward.1} parent=0 // pred_check
    _
  $region7: #{simconv_forward.1} parent=0 // pred_check_branch
    %12 = sbr.rel (0) target = $region9
  $region8: #{simconv_forward.1} parent=0 // pred_region
    _
  $region9: #{simconv_forward.1} parent=0 // pred_fallthru
    _
  // Predicated region
  $region10: #{simconv_forward.1} parent=0 // pred_check
    _
  $region11: #{simconv_forward.1} parent=0 // pred_check_branch
    %14 = sbr.rel (0) target = $region13
  $region12: #{simconv_forward.1} parent=0 // pred_region
    _
  $region13: #{simconv_forward.1} parent=0 // pred_fallthru
    _
  // Predicated region
  $region14: #{simconv_forward.1} parent=0 // pred_check
    _
  $region15: #{simconv_forward.1} parent=0 // pred_check_branch
    %16 = sbr.rel (0) target = $region17
  $region16: #{simconv_forward.1} parent=0 // pred_region
    _
  $region17: #{simconv_forward.1} parent=0 // pred_fallthru
    _
  %v17 = vld [vmem:[%s0] sm:$0xf]
  %v18 = vld [vmem:[%s0 + $0x4] sm:$0xf]
  %v19 = vld [vmem:[%s0 + $0x8] sm:$0xf]
  %v20 = vld [vmem:[%s0 + $0xc] sm:$0xf]
  %v21 = vld [vmem:[%s0 + $0x10] sm:$0xf]
  %v22 = vld [vmem:[%s0 + $0x14] sm:$0xf]
  %v23 = vld [vmem:[%s0 + $0x18] sm:$0xf]
  %v24 = vld [vmem:[%s0 + $0x1c] sm:$0xf]
  %v25 = vld [vmem:[%s0 + $0x20] sm:$0xf]
  %v26 = vld [vmem:[%s0 + $0x24] sm:$0xf]
  %v27 = vld [vmem:[%s0 + $0x28] sm:$0xf]
  %v28 = vld [vmem:[%s0 + $0x2c] sm:$0xf]
  %v29 = vld [vmem:[%s0 + $0x30] sm:$0xf]
  %v30 = vld [vmem:[%s0 + $0x34] sm:$0xf]
  %v31 = vld [vmem:[%s0 + $0x38] sm:$0xf]
  %v32 = vld [vmem:[%s0 + $0x3c] sm:$0xf]
  %v33 = vld [vmem:[%s1] sm:$0xf]
  %v34 = vld [vmem:[%s1 + $0x4] sm:$0xf]
  %v35 = vld [vmem:[%s1 + $0x8] sm:$0xf]
  %v36 = vld [vmem:[%s1 + $0xc] sm:$0xf]
  %v37 = vld [vmem:[%s1 + $0x10] sm:$0xf]
  %v38 = vld [vmem:[%s1 + $0x14] sm:$0xf]
  %v39 = vld [vmem:[%s1 + $0x18] sm:$0xf]
  %v40 = vld [vmem:[%s1 + $0x1c] sm:$0xf]
  %v41 = vld [vmem:[%s1 + $0x20] sm:$0xf]
  %v42 = vld [vmem:[%s1 + $0x24] sm:$0xf]
  %v43 = vld [vmem:[%s1 + $0x28] sm:$0xf]
  %v44 = vld [vmem:[%s1 + $0x2c] sm:$0xf]
  %v45 = vld [vmem:[%s1 + $0x30] sm:$0xf]
  %v46 = vld [vmem:[%s1 + $0x34] sm:$0xf]
  %v47 = vld [vmem:[%s1 + $0x38] sm:$0xf]
  %v48 = vld [vmem:[%s1 + $0x3c] sm:$0xf]
  %v65 = vunpack.c.l.b16 %v17
  %v66 = vunpack.c.l.b16 %v18
  %v67 = vunpack.c.l.b16 %v19
  %v68 = vunpack.c.l.b16 %v20
  %v69 = vunpack.c.l.b16 %v21
  %v70 = vunpack.c.l.b16 %v22
  %v71 = vunpack.c.l.b16 %v23
  %v72 = vunpack.c.l.b16 %v24
  %v73 = vunpack.c.l.b16 %v25
  %v74 = vunpack.c.l.b16 %v26
  %v75 = vunpack.c.l.b16 %v27
  %v76 = vunpack.c.l.b16 %v28
  %v77 = vunpack.c.l.b16 %v29
  %v78 = vunpack.c.l.b16 %v30
  %v79 = vunpack.c.l.b16 %v31
  %v80 = vunpack.c.l.b16 %v32
  %v81 = vpack.c.b16 %v66, %v65
  %v82 = vpack.c.b16 %v68, %v67
  %v83 = vpack.c.b16 %v70, %v69
  %v84 = vpack.c.b16 %v72, %v71
  %v85 = vpack.c.b16 %v74, %v73
  %v86 = vpack.c.b16 %v76, %v75
  %v87 = vpack.c.b16 %v78, %v77
  %v88 = vpack.c.b16 %v80, %v79
  %v113 = vunpack.c.l.b16 %v33
  %v114 = vunpack.c.l.b16 %v34
  %v115 = vunpack.c.l.b16 %v35
  %v116 = vunpack.c.l.b16 %v36
  %v117 = vunpack.c.l.b16 %v37
  %v118 = vunpack.c.l.b16 %v38
  %v119 = vunpack.c.l.b16 %v39
  %v120 = vunpack.c.l.b16 %v40
  %v121 = vunpack.c.l.b16 %v41
  %v122 = vunpack.c.l.b16 %v42
  %v123 = vunpack.c.l.b16 %v43
  %v124 = vunpack.c.l.b16 %v44
  %v125 = vunpack.c.l.b16 %v45
  %v126 = vunpack.c.l.b16 %v46
  %v127 = vunpack.c.l.b16 %v47
  %v128 = vunpack.c.l.b16 %v48
  %v129 = vpack.c.b16 %v114, %v113
  %v130 = vpack.c.b16 %v116, %v115
  %v131 = vpack.c.b16 %v118, %v117
  %v132 = vpack.c.b16 %v120, %v119
  %v133 = vpack.c.b16 %v122, %v121
  %v134 = vpack.c.b16 %v124, %v123
  %v135 = vpack.c.b16 %v126, %v125
  %v136 = vpack.c.b16 %v128, %v127
  %145 = vmatpush.bf16.msra.mxu0 %v136
  %146 = vmatpush.bf16.msra.mxu0 %v135
  %147 = vmatpush.bf16.msra.mxu0 %v134
  %148 = vmatpush.bf16.msra.mxu0 %v133
  %149 = vmatpush.bf16.msra.mxu0 %v132
  %150 = vmatpush.bf16.msra.mxu0 %v131
  %151 = vmatpush.bf16.msra.mxu0 %v130
  %152 = vmatpush.bf16.msra.mxu0 %v129
  %153 = vmatmul.bf16.gmra.mxu0 %v81
  %v154 = vpop.f32.mrf.mxu0
  %v155 = vadd.f32 0.0, %v154
  %v156 = vpop.f32.mrf.mxu0
  %v157 = vadd.f32 0.0, %v156
  %158 = vmatmul.bf16.gmra.mxu0 %v82
  %v159 = vpop.f32.mrf.mxu0
  %v160 = vadd.f32 0.0, %v159
  %v161 = vpop.f32.mrf.mxu0
  %v162 = vadd.f32 0.0, %v161
  %163 = vmatmul.bf16.gmra.mxu0 %v83
  %v164 = vpop.f32.mrf.mxu0
  %v165 = vadd.f32 0.0, %v164
  %v166 = vpop.f32.mrf.mxu0
  %v167 = vadd.f32 0.0, %v166
  %168 = vmatmul.bf16.gmra.mxu0 %v84
  %v169 = vpop.f32.mrf.mxu0
  %v170 = vadd.f32 0.0, %v169
  %v171 = vpop.f32.mrf.mxu0
  %v172 = vadd.f32 0.0, %v171
  %173 = vmatmul.bf16.gmra.mxu0 %v85
  %v174 = vpop.f32.mrf.mxu0
  %v175 = vadd.f32 0.0, %v174
  %v176 = vpop.f32.mrf.mxu0
  %v177 = vadd.f32 0.0, %v176
  %178 = vmatmul.bf16.gmra.mxu0 %v86
  %v179 = vpop.f32.mrf.mxu0
  %v180 = vadd.f32 0.0, %v179
  %v181 = vpop.f32.mrf.mxu0
  %v182 = vadd.f32 0.0, %v181
  %183 = vmatmul.bf16.gmra.mxu0 %v87
  %v184 = vpop.f32.mrf.mxu0
  %v185 = vadd.f32 0.0, %v184
  %v186 = vpop.f32.mrf.mxu0
  %v187 = vadd.f32 0.0, %v186
  %188 = vmatmul.bf16.gmra.mxu0 %v88
  %v189 = vpop.f32.mrf.mxu0
  %v190 = vadd.f32 0.0, %v189
  %v191 = vpop.f32.mrf.mxu0
  %v192 = vadd.f32 0.0, %v191
  %193 = vdwg.mxu0
  %v194 = vld [vmem:[%s2] sm:$0x1]
  %v196 = vperm.slane %v194, 0
  %v198 = vmul.f32 %v155, %v196
  %v199 = vmul.f32 %v157, %v196
  %v200 = vmul.f32 %v160, %v196
  %v201 = vmul.f32 %v162, %v196
  %v202 = vmul.f32 %v165, %v196
  %v203 = vmul.f32 %v167, %v196
  %v204 = vmul.f32 %v170, %v196
  %v205 = vmul.f32 %v172, %v196
  %v206 = vmul.f32 %v175, %v196
  %v207 = vmul.f32 %v177, %v196
  %v208 = vmul.f32 %v180, %v196
  %v209 = vmul.f32 %v182, %v196
  %v210 = vmul.f32 %v185, %v196
  %v211 = vmul.f32 %v187, %v196
  %v212 = vmul.f32 %v190, %v196
  %v213 = vmul.f32 %v192, %v196
  %v214 = vld [vmem:[%s3] sm:$0x1]
  %v216 = vperm.slane %v214, 0
  %v218 = vadd.f32 %v198, %v216
  %v219 = vadd.f32 %v199, %v216
  %v220 = vadd.f32 %v200, %v216
  %v221 = vadd.f32 %v201, %v216
  %v222 = vadd.f32 %v202, %v216
  %v223 = vadd.f32 %v203, %v216
  %v224 = vadd.f32 %v204, %v216
  %v225 = vadd.f32 %v205, %v216
  %v226 = vadd.f32 %v206, %v216
  %v227 = vadd.f32 %v207, %v216
  %v228 = vadd.f32 %v208, %v216
  %v229 = vadd.f32 %v209, %v216
  %v230 = vadd.f32 %v210, %v216
  %v231 = vadd.f32 %v211, %v216
  %v232 = vadd.f32 %v212, %v216
  %v233 = vadd.f32 %v213, %v216
  %v234 = vxor.u32 %v218, 2147483648
  %v235 = vxor.u32 %v219, 2147483648
  %v236 = vxor.u32 %v220, 2147483648
  %v237 = vxor.u32 %v221, 2147483648
  %v238 = vxor.u32 %v222, 2147483648
  %v239 = vxor.u32 %v223, 2147483648
  %v240 = vxor.u32 %v224, 2147483648
  %v241 = vxor.u32 %v225, 2147483648
  %v242 = vxor.u32 %v226, 2147483648
  %v243 = vxor.u32 %v227, 2147483648
  %v244 = vxor.u32 %v228, 2147483648
  %v245 = vxor.u32 %v229, 2147483648
  %v246 = vxor.u32 %v230, 2147483648
  %v247 = vxor.u32 %v231, 2147483648
  %v248 = vxor.u32 %v232, 2147483648
  %v249 = vxor.u32 %v233, 2147483648
  %v250 = vmul.f32 %v234, 1.442695
  %v251 = vpow.pop %v250
  %v252 = vmul.f32 %v235, 1.442695
  %v253 = vpow.pop %v252
  %v254 = vmul.f32 %v236, 1.442695
  %v255 = vpow.pop %v254
  %v256 = vmul.f32 %v237, 1.442695
  %v257 = vpow.pop %v256
  %v258 = vmul.f32 %v238, 1.442695
  %v259 = vpow.pop %v258
  %v260 = vmul.f32 %v239, 1.442695
  %v261 = vpow.pop %v260
  %v262 = vmul.f32 %v240, 1.442695
  %v263 = vpow.pop %v262
  %v264 = vmul.f32 %v241, 1.442695
  %v265 = vpow.pop %v264
  %v266 = vmul.f32 %v242, 1.442695
  %v267 = vpow.pop %v266
  %v268 = vmul.f32 %v243, 1.442695
  %v269 = vpow.pop %v268
  %v270 = vmul.f32 %v244, 1.442695
  %v271 = vpow.pop %v270
  %v272 = vmul.f32 %v245, 1.442695
  %v273 = vpow.pop %v272
  %v274 = vmul.f32 %v246, 1.442695
  %v275 = vpow.pop %v274
  %v276 = vmul.f32 %v247, 1.442695
  %v277 = vpow.pop %v276
  %v278 = vmul.f32 %v248, 1.442695
  %v279 = vpow.pop %v278
  %v280 = vmul.f32 %v249, 1.442695
  %v281 = vpow.pop %v280
  %v282 = vadd.f32 %v251, 1.0
  %v283 = vadd.f32 %v253, 1.0
  %v284 = vadd.f32 %v255, 1.0
  %v285 = vadd.f32 %v257, 1.0
  %v286 = vadd.f32 %v259, 1.0
  %v287 = vadd.f32 %v261, 1.0
  %v288 = vadd.f32 %v263, 1.0
  %v289 = vadd.f32 %v265, 1.0
  %v290 = vadd.f32 %v267, 1.0
  %v291 = vadd.f32 %v269, 1.0
  %v292 = vadd.f32 %v271, 1.0
  %v293 = vadd.f32 %v273, 1.0
  %v294 = vadd.f32 %v275, 1.0
  %v295 = vadd.f32 %v277, 1.0
  %v296 = vadd.f32 %v279, 1.0
  %v297 = vadd.f32 %v281, 1.0
  %v298 = vrcp.pop %v282
  %v299 = vmul.f32 %v282, %v298
  %v300 = vsub.f32 1.0, %v299
  %v301 = vmul.f32 %v298, %v300
  %v302 = vadd.f32 %v298, %v301
  %vm303 = vweird.f32 %v282
  %vm304 = vweird.f32 %v298
  %vm305 = vmor %vm303, %vm304
  %v306 = vsel %vm305, %v298, %v302
  %v307 = vand.u32 2147483647, %v282
  %vm308 = vcmp.eq.f32.partialorder %v307, 8.507059e+37
  %v309 = vand.u32 %v282, 2147483648
  %v310 = vor.u32 1.1754944e-38, %v309
  %v311 = vsel %vm308, %v310, %v306
  %v312 = vmul.f32 1.0, %v311
  %v313 = vrcp.pop %v283
  %v314 = vmul.f32 %v283, %v313
  %v315 = vsub.f32 1.0, %v314
  %v316 = vmul.f32 %v313, %v315
  %v317 = vadd.f32 %v313, %v316
  %vm318 = vweird.f32 %v283
  %vm319 = vweird.f32 %v313
  %vm320 = vmor %vm318, %vm319
  %v321 = vsel %vm320, %v313, %v317
  %v322 = vand.u32 2147483647, %v283
  %vm323 = vcmp.eq.f32.partialorder %v322, 8.507059e+37
  %v324 = vand.u32 %v283, 2147483648
  %v325 = vor.u32 1.1754944e-38, %v324
  %v326 = vsel %vm323, %v325, %v321
  %v327 = vmul.f32 1.0, %v326
  %v328 = vrcp.pop %v284
  %v329 = vmul.f32 %v284, %v328
  %v330 = vsub.f32 1.0, %v329
  %v331 = vmul.f32 %v328, %v330
  %v332 = vadd.f32 %v328, %v331
  %vm333 = vweird.f32 %v284
  %vm334 = vweird.f32 %v328
  %vm335 = vmor %vm333, %vm334
  %v336 = vsel %vm335, %v328, %v332
  %v337 = vand.u32 2147483647, %v284
  %vm338 = vcmp.eq.f32.partialorder %v337, 8.507059e+37
  %v339 = vand.u32 %v284, 2147483648
  %v340 = vor.u32 1.1754944e-38, %v339
  %v341 = vsel %vm338, %v340, %v336
  %v342 = vmul.f32 1.0, %v341
  %v343 = vrcp.pop %v285
  %v344 = vmul.f32 %v285, %v343
  %v345 = vsub.f32 1.0, %v344
  %v346 = vmul.f32 %v343, %v345
  %v347 = vadd.f32 %v343, %v346
  %vm348 = vweird.f32 %v285
  %vm349 = vweird.f32 %v343
  %vm350 = vmor %vm348, %vm349
  %v351 = vsel %vm350, %v343, %v347
  %v352 = vand.u32 2147483647, %v285
  %vm353 = vcmp.eq.f32.partialorder %v352, 8.507059e+37
  %v354 = vand.u32 %v285, 2147483648
  %v355 = vor.u32 1.1754944e-38, %v354
  %v356 = vsel %vm353, %v355, %v351
  %v357 = vmul.f32 1.0, %v356
  %v358 = vrcp.pop %v286
  %v359 = vmul.f32 %v286, %v358
  %v360 = vsub.f32 1.0, %v359
  %v361 = vmul.f32 %v358, %v360
  %v362 = vadd.f32 %v358, %v361
  %vm363 = vweird.f32 %v286
  %vm364 = vweird.f32 %v358
  %vm365 = vmor %vm363, %vm364
  %v366 = vsel %vm365, %v358, %v362
  %v367 = vand.u32 2147483647, %v286
  %vm368 = vcmp.eq.f32.partialorder %v367, 8.507059e+37
  %v369 = vand.u32 %v286, 2147483648
  %v370 = vor.u32 1.1754944e-38, %v369
  %v371 = vsel %vm368, %v370, %v366
  %v372 = vmul.f32 1.0, %v371
  %v373 = vrcp.pop %v287
  %v374 = vmul.f32 %v287, %v373
  %v375 = vsub.f32 1.0, %v374
  %v376 = vmul.f32 %v373, %v375
  %v377 = vadd.f32 %v373, %v376
  %vm378 = vweird.f32 %v287
  %vm379 = vweird.f32 %v373
  %vm380 = vmor %vm378, %vm379
  %v381 = vsel %vm380, %v373, %v377
  %v382 = vand.u32 2147483647, %v287
  %vm383 = vcmp.eq.f32.partialorder %v382, 8.507059e+37
  %v384 = vand.u32 %v287, 2147483648
  %v385 = vor.u32 1.1754944e-38, %v384
  %v386 = vsel %vm383, %v385, %v381
  %v387 = vmul.f32 1.0, %v386
  %v388 = vrcp.pop %v288
  %v389 = vmul.f32 %v288, %v388
  %v390 = vsub.f32 1.0, %v389
  %v391 = vmul.f32 %v388, %v390
  %v392 = vadd.f32 %v388, %v391
  %vm393 = vweird.f32 %v288
  %vm394 = vweird.f32 %v388
  %vm395 = vmor %vm393, %vm394
  %v396 = vsel %vm395, %v388, %v392
  %v397 = vand.u32 2147483647, %v288
  %vm398 = vcmp.eq.f32.partialorder %v397, 8.507059e+37
  %v399 = vand.u32 %v288, 2147483648
  %v400 = vor.u32 1.1754944e-38, %v399
  %v401 = vsel %vm398, %v400, %v396
  %v402 = vmul.f32 1.0, %v401
  %v403 = vrcp.pop %v289
  %v404 = vmul.f32 %v289, %v403
  %v405 = vsub.f32 1.0, %v404
  %v406 = vmul.f32 %v403, %v405
  %v407 = vadd.f32 %v403, %v406
  %vm408 = vweird.f32 %v289
  %vm409 = vweird.f32 %v403
  %vm410 = vmor %vm408, %vm409
  %v411 = vsel %vm410, %v403, %v407
  %v412 = vand.u32 2147483647, %v289
  %vm413 = vcmp.eq.f32.partialorder %v412, 8.507059e+37
  %v414 = vand.u32 %v289, 2147483648
  %v415 = vor.u32 1.1754944e-38, %v414
  %v416 = vsel %vm413, %v415, %v411
  %v417 = vmul.f32 1.0, %v416
  %v418 = vrcp.pop %v290
  %v419 = vmul.f32 %v290, %v418
  %v420 = vsub.f32 1.0, %v419
  %v421 = vmul.f32 %v418, %v420
  %v422 = vadd.f32 %v418, %v421
  %vm423 = vweird.f32 %v290
  %vm424 = vweird.f32 %v418
  %vm425 = vmor %vm423, %vm424
  %v426 = vsel %vm425, %v418, %v422
  %v427 = vand.u32 2147483647, %v290
  %vm428 = vcmp.eq.f32.partialorder %v427, 8.507059e+37
  %v429 = vand.u32 %v290, 2147483648
  %v430 = vor.u32 1.1754944e-38, %v429
  %v431 = vsel %vm428, %v430, %v426
  %v432 = vmul.f32 1.0, %v431
  %v433 = vrcp.pop %v291
  %v434 = vmul.f32 %v291, %v433
  %v435 = vsub.f32 1.0, %v434
  %v436 = vmul.f32 %v433, %v435
  %v437 = vadd.f32 %v433, %v436
  %vm438 = vweird.f32 %v291
  %vm439 = vweird.f32 %v433
  %vm440 = vmor %vm438, %vm439
  %v441 = vsel %vm440, %v433, %v437
  %v442 = vand.u32 2147483647, %v291
  %vm443 = vcmp.eq.f32.partialorder %v442, 8.507059e+37
  %v444 = vand.u32 %v291, 2147483648
  %v445 = vor.u32 1.1754944e-38, %v444
  %v446 = vsel %vm443, %v445, %v441
  %v447 = vmul.f32 1.0, %v446
  %v448 = vrcp.pop %v292
  %v449 = vmul.f32 %v292, %v448
  %v450 = vsub.f32 1.0, %v449
  %v451 = vmul.f32 %v448, %v450
  %v452 = vadd.f32 %v448, %v451
  %vm453 = vweird.f32 %v292
  %vm454 = vweird.f32 %v448
  %vm455 = vmor %vm453, %vm454
  %v456 = vsel %vm455, %v448, %v452
  %v457 = vand.u32 2147483647, %v292
  %vm458 = vcmp.eq.f32.partialorder %v457, 8.507059e+37
  %v459 = vand.u32 %v292, 2147483648
  %v460 = vor.u32 1.1754944e-38, %v459
  %v461 = vsel %vm458, %v460, %v456
  %v462 = vmul.f32 1.0, %v461
  %v463 = vrcp.pop %v293
  %v464 = vmul.f32 %v293, %v463
  %v465 = vsub.f32 1.0, %v464
  %v466 = vmul.f32 %v463, %v465
  %v467 = vadd.f32 %v463, %v466
  %vm468 = vweird.f32 %v293
  %vm469 = vweird.f32 %v463
  %vm470 = vmor %vm468, %vm469
  %v471 = vsel %vm470, %v463, %v467
  %v472 = vand.u32 2147483647, %v293
  %vm473 = vcmp.eq.f32.partialorder %v472, 8.507059e+37
  %v474 = vand.u32 %v293, 2147483648
  %v475 = vor.u32 1.1754944e-38, %v474
  %v476 = vsel %vm473, %v475, %v471
  %v477 = vmul.f32 1.0, %v476
  %v478 = vrcp.pop %v294
  %v479 = vmul.f32 %v294, %v478
  %v480 = vsub.f32 1.0, %v479
  %v481 = vmul.f32 %v478, %v480
  %v482 = vadd.f32 %v478, %v481
  %vm483 = vweird.f32 %v294
  %vm484 = vweird.f32 %v478
  %vm485 = vmor %vm483, %vm484
  %v486 = vsel %vm485, %v478, %v482
  %v487 = vand.u32 2147483647, %v294
  %vm488 = vcmp.eq.f32.partialorder %v487, 8.507059e+37
  %v489 = vand.u32 %v294, 2147483648
  %v490 = vor.u32 1.1754944e-38, %v489
  %v491 = vsel %vm488, %v490, %v486
  %v492 = vmul.f32 1.0, %v491
  %v493 = vrcp.pop %v295
  %v494 = vmul.f32 %v295, %v493
  %v495 = vsub.f32 1.0, %v494
  %v496 = vmul.f32 %v493, %v495
  %v497 = vadd.f32 %v493, %v496
  %vm498 = vweird.f32 %v295
  %vm499 = vweird.f32 %v493
  %vm500 = vmor %vm498, %vm499
  %v501 = vsel %vm500, %v493, %v497
  %v502 = vand.u32 2147483647, %v295
  %vm503 = vcmp.eq.f32.partialorder %v502, 8.507059e+37
  %v504 = vand.u32 %v295, 2147483648
  %v505 = vor.u32 1.1754944e-38, %v504
  %v506 = vsel %vm503, %v505, %v501
  %v507 = vmul.f32 1.0, %v506
  %v508 = vrcp.pop %v296
  %v509 = vmul.f32 %v296, %v508
  %v510 = vsub.f32 1.0, %v509
  %v511 = vmul.f32 %v508, %v510
  %v512 = vadd.f32 %v508, %v511
  %vm513 = vweird.f32 %v296
  %vm514 = vweird.f32 %v508
  %vm515 = vmor %vm513, %vm514
  %v516 = vsel %vm515, %v508, %v512
  %v517 = vand.u32 2147483647, %v296
  %vm518 = vcmp.eq.f32.partialorder %v517, 8.507059e+37
  %v519 = vand.u32 %v296, 2147483648
  %v520 = vor.u32 1.1754944e-38, %v519
  %v521 = vsel %vm518, %v520, %v516
  %v522 = vmul.f32 1.0, %v521
  %v523 = vrcp.pop %v297
  %v524 = vmul.f32 %v297, %v523
  %v525 = vsub.f32 1.0, %v524
  %v526 = vmul.f32 %v523, %v525
  %v527 = vadd.f32 %v523, %v526
  %vm528 = vweird.f32 %v297
  %vm529 = vweird.f32 %v523
  %vm530 = vmor %vm528, %vm529
  %v531 = vsel %vm530, %v523, %v527
  %v532 = vand.u32 2147483647, %v297
  %vm533 = vcmp.eq.f32.partialorder %v532, 8.507059e+37
  %v534 = vand.u32 %v297, 2147483648
  %v535 = vor.u32 1.1754944e-38, %v534
  %v536 = vsel %vm533, %v535, %v531
  %v537 = vmul.f32 1.0, %v536
  %v538 = vmul.f32 %v218, %v312
  %v539 = vmul.f32 %v219, %v327
  %v540 = vmul.f32 %v220, %v342
  %v541 = vmul.f32 %v221, %v357
  %v542 = vmul.f32 %v222, %v372
  %v543 = vmul.f32 %v223, %v387
  %v544 = vmul.f32 %v224, %v402
  %v545 = vmul.f32 %v225, %v417
  %v546 = vmul.f32 %v226, %v432
  %v547 = vmul.f32 %v227, %v447
  %v548 = vmul.f32 %v228, %v462
  %v549 = vmul.f32 %v229, %v477
  %v550 = vmul.f32 %v230, %v492
  %v551 = vmul.f32 %v231, %v507
  %v552 = vmul.f32 %v232, %v522
  %v553 = vmul.f32 %v233, %v537
  %554 = vst [vmem:[%s4] sm:$0xff] %v538
  %555 = vst [vmem:[%s4 + $0x8] sm:$0xff] %v539
  %556 = vst [vmem:[%s4 + $0x10] sm:$0xff] %v540
  %557 = vst [vmem:[%s4 + $0x18] sm:$0xff] %v541
  %558 = vst [vmem:[%s4 + $0x20] sm:$0xff] %v542
  %559 = vst [vmem:[%s4 + $0x28] sm:$0xff] %v543
  %560 = vst [vmem:[%s4 + $0x30] sm:$0xff] %v544
  %561 = vst [vmem:[%s4 + $0x38] sm:$0xff] %v545
  %562 = vst [vmem:[%s4 + $0x40] sm:$0xff] %v546
  %563 = vst [vmem:[%s4 + $0x48] sm:$0xff] %v547
  %564 = vst [vmem:[%s4 + $0x50] sm:$0xff] %v548
  %565 = vst [vmem:[%s4 + $0x58] sm:$0xff] %v549
  %566 = vst [vmem:[%s4 + $0x60] sm:$0xff] %v550
  %567 = vst [vmem:[%s4 + $0x68] sm:$0xff] %v551
  %568 = vst [vmem:[%s4 + $0x70] sm:$0xff] %v552
  %569 = vst [vmem:[%s4 + $0x78] sm:$0xff] %v553
  // Predicated region
  $region18: #{simconv_forward.1} parent=0 // pred_check
    _
  $region19: #{simconv_forward.1} parent=0 // pred_check_branch
    %571 = sbr.rel (0) target = $region21
  $region20: #{simconv_forward.1} parent=0 // pred_region
    _
  $region21: #{simconv_forward.1} parent=0 // pred_fallthru
    _
  // Predicated region
  $region22: #{simconv_forward.1} parent=0 // pred_check
    _
  $region23: #{simconv_forward.1} parent=0 // pred_check_branch
    %573 = sbr.rel (0) target = $region25
  $region24: #{simconv_forward.1} parent=0 // pred_region
    _
  $region25: #{simconv_forward.1} parent=0 // pred_fallthru
    _

</llo_original>
